<compile_context>
chip_gen: v6e
topology: v6e:2x2x1
jax: 0.10.0
libtpu: 0.0.40
codegen_flags: <defaults>
</compile_context>

<pallas_src>
import numpy as np
import jax
import jax.numpy as jnp
from jax.experimental import pallas as pl
from jax.experimental.pallas import tpu as pltpu

# Model / layout constants (W * WIDTH == 128 -> lane-dense trunk).
H = 16
W = 16
IN_CH = 3
WIDTH = 8
NUM_CLASSES = 10
LANES = W * WIDTH          # 128
FEAT_OFF = 16              # feat lanes 16..23 in the packed output


def _full_spec(shape):
    zero = (0,) * len(shape)
    return pl.BlockSpec(shape, lambda i, _z=zero: _z)


# ----------------------------------------------------------------------------
# Fused forward kernel: stem -> block(conv1, conv2+id) -> GAP -> packed head
# ----------------------------------------------------------------------------
def _fused_forward_kernel(x_ref, w_ref, b_ref, head_ref, out_ref, col_ref):
    f32 = jnp.float32
    bf16 = jnp.bfloat16
    n = x_ref.shape[0]
    LC = LANES

    b_all = b_ref[...]                                   # (4, 128) f32

    # Halo rows of the im2col slab that no conv ever overwrites: zero once.
    col_ref[:, 0:1, 0:LC] = jnp.zeros((n, 1, LC), f32)
    col_ref[:, H - 1:H, 2 * LC:3 * LC] = jnp.zeros((n, 1, LC), f32)

    def conv3x3(act, widx, bidx, residual=None, relu=True):
        # act: (n, H, 128) f32.  Stage one im2col slab so each conv is a
        # single MXU matmul with K = 3*128 (bf16 operands, f32 accumulation).
        col_ref[:, 1:H, 0:LC] = act[:, 0:H - 1, :]            # kh=0: row h-1
        col_ref[:, :, LC:2 * LC] = act                         # kh=1: row h
        col_ref[:, 0:H - 1, 2 * LC:3 * LC] = act[:, 1:H, :]    # kh=2: row h+1
        lhs = col_ref[...].reshape(n * H, 3 * LC).astype(bf16)
        y = jnp.dot(lhs, w_ref[widx], preferred_element_type=f32)  # (n*H, 128)
        y = y + b_all[bidx:bidx + 1, :]                    # folded-BN bias
        if residual is not None:
            y = y + residual
        if relu:
            y = jnp.maximum(y, 0.0)
        return y                                           # (n*H, 128) f32

    x = x_ref[...].astype(f32)                             # (n, H, 128), lanes >= 48 are zero
    h0 = conv3x3(x, 0, 0)                                  # stem
    h1 = conv3x3(h0.reshape(n, H, LC), 1, 1)               # block conv1
    h2 = conv3x3(h1.reshape(n, H, LC), 2, 2, residual=h0)  # block conv2 + id

    # ---- GAP + packed head: one dot yields logits (lanes 0..9) and feat
    # (lanes 16..23) in a single lane-dense 128-lane output block.
    img_sum = jnp.sum(h2.reshape(n, H, LC), axis=1)        # (n, 128)
    out = jnp.dot(img_sum, head_ref[...], preferred_element_type=f32)
    out_ref[...] = (out + b_all[3:4, :]).astype(out_ref.dtype)


def fused_forward(x_pad, prep, batch_block=None):
    """x_pad: (n, H, 128) lane-padded activations.  Returns packed (n, 128)."""
    n = x_pad.shape[0]
    dt = x_pad.dtype
    if batch_block is None or batch_block >= n:
        batch_block = n
    assert n % batch_block == 0
    nb = n // batch_block
    if nb > 1:
        # Needed so per-step output blocks stay sublane-aligned.
        assert batch_block % 8 == 0
    return pl.pallas_call(
        _fused_forward_kernel,
        out_shape=jax.ShapeDtypeStruct((n, LANES), dt),
        grid=(nb,),
        in_specs=[
            pl.BlockSpec((batch_block, H, LANES), lambda i: (i, 0, 0)),   # x
            pl.BlockSpec((3, 3 * LANES, LANES), lambda i: (0, 0, 0)),     # conv weights (bf16)
            pl.BlockSpec((4, LANES), lambda i: (0, 0)),                   # bias slab (f32)
            pl.BlockSpec((LANES, LANES), lambda i: (0, 0)),               # GAP+fc head (f32)
        ],
        out_specs=pl.BlockSpec((batch_block, LANES), lambda i: (i, 0)),
        scratch_shapes=[pltpu.VMEM((batch_block, H, 3 * LANES), jnp.float32)],
        compiler_params=pltpu.CompilerParams(
            dimension_semantics=("parallel",)),
    )(x_pad, prep["w"], prep["bias"], prep["head"])


# ----------------------------------------------------------------------------
# Standalone fc kernel (for the only_fc path)
# ----------------------------------------------------------------------------
def _fc_kernel(x_ref, w_ref, b_ref, o_ref):
    y = jnp.dot(x_ref[...].astype(jnp.float32), w_ref[...].astype(jnp.float32),
                preferred_element_type=jnp.float32)
    o_ref[...] = (y + b_ref[...]).astype(o_ref.dtype)


def fc_forward(x, fc_w, fc_b):
    n, cin = x.shape
    cout = fc_w.shape[1]
    return pl.pallas_call(
        _fc_kernel,
        out_shape=jax.ShapeDtypeStruct((n, cout), x.dtype),
        grid=(1,),
        in_specs=[_full_spec((n, cin)), _full_spec((cin, cout)),
                  _full_spec((1, cout))],
        out_specs=_full_spec((n, cout)),
    )(x, fc_w, fc_b)


# ----------------------------------------------------------------------------
# Host-side, one-time parameter preparation (BN fold + banded + K-concat)
# ----------------------------------------------------------------------------
def _banded_kconcat_weight(w_hwio, bn_scale):
    """Fold eval-BN scale into the conv weight and build a (3*128, 128) matrix:
    the kh taps are concatenated along K (matching the im2col slab), the W
    taps / W zero-padding are block-banded inside each 128-row segment, and
    stem input lanes 48..127 map to zero rows (matching the zero-padded x)."""
    _, _, cin, cout = w_hwio.shape
    wf = np.asarray(w_hwio, np.float32) * np.asarray(bn_scale, np.float32).reshape(1, 1, 1, cout)
    banded = np.zeros((3, LANES, LANES), np.float32)
    for kh in range(3):
        for kw in range(3):
            for wo in range(W):
                wi = wo + kw - 1
                if 0 <= wi < W:
                    banded[kh, wi * cin:(wi + 1) * cin,
                           wo * cout:(wo + 1) * cout] = wf[kh, kw]
    return banded.reshape(3 * LANES, LANES)


def _prep_params(p):
    w_slab = np.stack([
        _banded_kconcat_weight(p["stem_w"], p["stem_scale"]),
        _banded_kconcat_weight(p["b1_w"], p["b1_scale"]),
        _banded_kconcat_weight(p["b2_w"], p["b2_scale"]),
    ], axis=0)                                              # (3, 384, 128)

    bias = np.zeros((4, LANES), np.float32)
    bias[0] = np.tile(np.asarray(p["stem_bias"], np.float32), W)
    bias[1] = np.tile(np.asarray(p["b1_bias"], np.float32), W)
    bias[2] = np.tile(np.asarray(p["b2_bias"], np.float32), W)
    bias[3, :NUM_CLASSES] = np.asarray(p["fc_b"], np.float32)

    pool = np.zeros((LANES, WIDTH), np.float32)             # lane -> channel one-hot
    pool[np.arange(LANES), np.arange(LANES) % WIDTH] = 1.0
    head = np.zeros((LANES, LANES), np.float32)
    head[:, :NUM_CLASSES] = (pool @ np.asarray(p["fc_w"], np.float32)) / float(H * W)
    head[:, FEAT_OFF:FEAT_OFF + WIDTH] = pool / float(H * W)

    return {
        "w": jnp.asarray(w_slab, jnp.bfloat16),             # bf16 MXU operands
        "bias": jnp.asarray(bias, jnp.float32),
        "head": jnp.asarray(head, jnp.float32),
        "fc_w": p["fc_w"],
        "fc_b": jnp.reshape(p["fc_b"], (1, NUM_CLASSES)),
    }


# ----------------------------------------------------------------------------
# MmeResNet
# ----------------------------------------------------------------------------
class MmeResNetPallas:
    def __init__(self, key, in_ch=IN_CH, width=WIDTH, num_classes=NUM_CLASSES):
        assert in_ch == IN_CH and width == WIDTH and num_classes == NUM_CLASSES
        ks = jax.random.split(key, 4)

        def conv_w(k, cin, cout):
            return (jax.random.normal(k, (3, 3, cin, cout), jnp.float32)
                    * (1.0 / jnp.sqrt(9.0 * cin)))

        self.params = {
            "stem_w": conv_w(ks[0], in_ch, width),
            "stem_scale": jnp.ones((width,), jnp.float32),
            "stem_bias": jnp.zeros((width,), jnp.float32),
            "b1_w": conv_w(ks[1], width, width),
            "b1_scale": jnp.ones((width,), jnp.float32),
            "b1_bias": jnp.zeros((width,), jnp.float32),
            "b2_w": conv_w(ks[2], width, width),
            "b2_scale": jnp.ones((width,), jnp.float32),
            "b2_bias": jnp.zeros((width,), jnp.float32),
            "fc_w": (jax.random.normal(ks[3], (width, num_classes), jnp.float32)
                     * (1.0 / jnp.sqrt(width))),
            "fc_b": jnp.zeros((num_classes,), jnp.float32),
        }
        self.output_dim = width
        self._prep = _prep_params(self.params)

    def _encode_and_classify(self, x_nchw):
        # NCHW -> NHWC -> lane-dense (N, H, 128); pure layout glue.
        n = x_nchw.shape[0]
        x_flat = jnp.transpose(x_nchw, (0, 2, 3, 1)).reshape(n, H, W * IN_CH)
        x_pad = jnp.pad(x_flat, ((0, 0), (0, 0), (0, LANES - W * IN_CH)))
        packed = fused_forward(x_pad, self._prep)
        logits = packed[:, :NUM_CLASSES]
        feat = packed[:, FEAT_OFF:FEAT_OFF + WIDTH]
        return logits, feat

    def fc(self, feat):
        return fc_forward(feat, self._prep["fc_w"], self._prep["fc_b"])

    def forward(self, x, only_fc=False, only_feat=False, reverse=False,
                **kwargs):
        if only_fc:
            # TODO(synk): grad_reverse only negates gradients in backward; its
            # forward pass is the identity, so `reverse` is a no-op here.
            return self.fc(x)
        logits, feat = self._encode_and_classify(x)
        if only_feat:
            return feat                  # == torch.flatten(encoder(x), 1)
        return {"logits": logits, "feat": feat}


# ----------------------------------------------------------------------------
# Pure-JAX reference (correctness check only)
# ----------------------------------------------------------------------------
def _reference_forward(params, x_nchw):
    hp = jax.lax.Precision.HIGHEST
    x = jnp.transpose(x_nchw, (0, 2, 3, 1))

    def conv_bn(h, w, scale, bias, relu=True, residual=None):
        y = jax.lax.conv_general_dilated(
            h, w, window_strides=(1, 1), padding="SAME",
            dimension_numbers=("NHWC", "HWIO", "NHWC"), precision=hp)
        y = y * scale + bias
        if residual is not None:
            y = y + residual
        return jnp.maximum(y, 0.0) if relu else y

    p = params
    h0 = conv_bn(x, p["stem_w"], p["stem_scale"], p["stem_bias"])
    h1 = conv_bn(h0, p["b1_w"], p["b1_scale"], p["b1_bias"])
    h2 = conv_bn(h1, p["b2_w"], p["b2_scale"], p["b2_bias"], residual=h0)
    feat = jnp.mean(h2, axis=(1, 2))
    logits = jnp.dot(feat, p["fc_w"], precision=hp) + p["fc_b"]
    return logits, feat


if __name__ == "__main__":
    key = jax.random.PRNGKey(0)
    k_param, k_x = jax.random.split(key)

    model = MmeResNetPallas(k_param)
    x = jax.random.normal(k_x, (2, IN_CH, H, W), jnp.float32)   # NCHW

    out = model.forward(x)
    jax.block_until_ready(out["logits"])
    jax.block_until_ready(out["feat"])
    assert out["logits"].shape == (2, NUM_CLASSES)
    assert out["feat"].shape == (2, WIDTH)

    # Numerical check against a pure-JAX f32 reference.  Trunk matmuls use
    # bf16 MXU operands (f32 accumulation), so use a bf16-appropriate tol.
    ref_logits, ref_feat = _reference_forward(model.params, x)
    np.testing.assert_allclose(np.asarray(out["feat"]), np.asarray(ref_feat),
                               rtol=2e-2, atol=2e-2)
    np.testing.assert_allclose(np.asarray(out["logits"]), np.asarray(ref_logits),
                               rtol=2e-2, atol=2e-2)

    # Exercise only_feat / only_fc(+reverse) paths.
    feat = model.forward(x, only_feat=True)
    logits_rev = model.forward(feat, only_fc=True, reverse=True)
    jax.block_until_ready(logits_rev)
    assert logits_rev.shape == (2, NUM_CLASSES)

    print("KERNEL_OK")
</pallas_src>

<mosaic_0001>
module attributes {stable_mosaic.version = 11 : i64} {
  func.func @_fused_forward_kernel(%arg0: i32, %arg1: memref<2x16x128xf32, #tpu.memory_space<vmem>>, %arg2: memref<3x384x128xbf16, #tpu.memory_space<vmem>>, %arg3: memref<4x128xf32, #tpu.memory_space<vmem>>, %arg4: memref<128x128xf32, #tpu.memory_space<vmem>>, %arg5: memref<2x128xf32, #tpu.memory_space<vmem>>, %arg6: memref<2x16x384xf32, #tpu.memory_space<vmem>>) attributes {dimension_semantics = [#tpu.dimension_semantics<parallel>], iteration_bounds = array<i64: 1>, scalar_prefetch = 0 : i64, scratch_operands = 1 : i64, tpu.core_type = #tpu.core_type<tc>, window_params = [{transform_indices = @transform_0, window_bounds = array<i64: 2, 16, 128>}, {pipeline_mode = #tpu.pipeline_mode<synchronous>, transform_indices = @transform_1, window_bounds = array<i64: 3, 384, 128>}, {pipeline_mode = #tpu.pipeline_mode<synchronous>, transform_indices = @transform_2, window_bounds = array<i64: 4, 128>}, {pipeline_mode = #tpu.pipeline_mode<synchronous>, transform_indices = @transform_3, window_bounds = array<i64: 128, 128>}, {transform_indices = @transform_4, window_bounds = array<i64: 2, 128>}]} {
    %c0 = arith.constant 0 : index
    %c0_0 = arith.constant 0 : index
    %0 = vector.load %arg3[%c0, %c0_0] : memref<4x128xf32, #tpu.memory_space<vmem>>, vector<4x128xf32>
    %cst = arith.constant 0.000000e+00 : f32
    %1 = vector.broadcast %cst : f32 to vector<2x1x128xf32>
    %c0_1 = arith.constant 0 : index
    %c0_2 = arith.constant 0 : index
    %c0_3 = arith.constant 0 : index
    %2 = vector.load %arg6[%c0_1, %c0_2, %c0_3] : memref<2x16x384xf32, #tpu.memory_space<vmem>>, vector<2x1x128xf32>
    tpu.vector_store %arg6[%c0_1, %c0_2, %c0_3], %1 {strides = array<i32>} : memref<2x16x384xf32, #tpu.memory_space<vmem>>, vector<2x1x128xf32>,
    %cst_4 = arith.constant 0.000000e+00 : f32
    %3 = vector.broadcast %cst_4 : f32 to vector<2x1x128xf32>
    %c0_5 = arith.constant 0 : index
    %c15 = arith.constant 15 : index
    %c256 = arith.constant 256 : index
    %4 = vector.load %arg6[%c0_5, %c15, %c256] : memref<2x16x384xf32, #tpu.memory_space<vmem>>, vector<2x1x128xf32>
    tpu.vector_store %arg6[%c0_5, %c15, %c256], %3 {strides = array<i32>} : memref<2x16x384xf32, #tpu.memory_space<vmem>>, vector<2x1x128xf32>,
    %c0_6 = arith.constant 0 : index
    %c0_7 = arith.constant 0 : index
    %c0_8 = arith.constant 0 : index
    %5 = vector.load %arg1[%c0_6, %c0_7, %c0_8] : memref<2x16x128xf32, #tpu.memory_space<vmem>>, vector<2x16x128xf32>
    %6 = vector.extract_strided_slice %5 {offsets = [0, 0, 0], sizes = [2, 15, 128], strides = [1, 1, 1]} : vector<2x16x128xf32> to vector<2x15x128xf32>
    %c0_9 = arith.constant 0 : index
    %c1 = arith.constant 1 : index
    %c0_10 = arith.constant 0 : index
    %7 = vector.load %arg6[%c0_9, %c1, %c0_10] : memref<2x16x384xf32, #tpu.memory_space<vmem>>, vector<2x15x128xf32>
    tpu.vector_store %arg6[%c0_9, %c1, %c0_10], %6 {strides = array<i32>} : memref<2x16x384xf32, #tpu.memory_space<vmem>>, vector<2x15x128xf32>,
    %c0_11 = arith.constant 0 : index
    %c0_12 = arith.constant 0 : index
    %c128 = arith.constant 128 : index
    %8 = vector.load %arg6[%c0_11, %c0_12, %c128] : memref<2x16x384xf32, #tpu.memory_space<vmem>>, vector<2x16x128xf32>
    tpu.vector_store %arg6[%c0_11, %c0_12, %c128], %5 {strides = array<i32>} : memref<2x16x384xf32, #tpu.memory_space<vmem>>, vector<2x16x128xf32>,
    %9 = vector.extract_strided_slice %5 {offsets = [0, 1, 0], sizes = [2, 15, 128], strides = [1, 1, 1]} : vector<2x16x128xf32> to vector<2x15x128xf32>
    %c0_13 = arith.constant 0 : index
    %c0_14 = arith.constant 0 : index
    %c256_15 = arith.constant 256 : index
    %10 = vector.load %arg6[%c0_13, %c0_14, %c256_15] : memref<2x16x384xf32, #tpu.memory_space<vmem>>, vector<2x15x128xf32>
    tpu.vector_store %arg6[%c0_13, %c0_14, %c256_15], %9 {strides = array<i32>} : memref<2x16x384xf32, #tpu.memory_space<vmem>>, vector<2x15x128xf32>,
    %c0_16 = arith.constant 0 : index
    %c0_17 = arith.constant 0 : index
    %c0_18 = arith.constant 0 : index
    %11 = vector.load %arg6[%c0_16, %c0_17, %c0_18] : memref<2x16x384xf32, #tpu.memory_space<vmem>>, vector<2x16x384xf32>
    %12 = vector.shape_cast %11 : vector<2x16x384xf32> to vector<32x384xf32>
    %13 = arith.truncf %12 : vector<32x384xf32> to vector<32x384xbf16>
    %c0_19 = arith.constant 0 : index
    %c0_20 = arith.constant 0 : index
    %c0_21 = arith.constant 0 : index
    %14 = vector.load %arg2[%c0_19, %c0_20, %c0_21] : memref<3x384x128xbf16, #tpu.memory_space<vmem>>, vector<1x384x128xbf16>
    %15 = vector.shape_cast %14 : vector<1x384x128xbf16> to vector<384x128xbf16>
    %cst_22 = arith.constant dense<0.000000e+00> : vector<32x128xf32>
    %16 = tpu.matmul %13, %15, %cst_22 {dimension_numbers = #tpu.dot_dimension_numbers<[1], [0], [0], [1], [0, 0, 1, 1], [], []>} : vector<32x384xbf16>, vector<384x128xbf16>, vector<32x128xf32> -> vector<32x128xf32>
    %17 = vector.extract_strided_slice %0 {offsets = [0, 0], sizes = [1, 128], strides = [1, 1]} : vector<4x128xf32> to vector<1x128xf32>
    %18 = vector.broadcast %17 : vector<1x128xf32> to vector<32x128xf32>
    %19 = arith.addf %16, %18 : vector<32x128xf32>
    %cst_23 = arith.constant 0.000000e+00 : f32
    %20 = vector.broadcast %cst_23 : f32 to vector<32x128xf32>
    %21 = arith.maximumf %19, %20 : vector<32x128xf32>
    %22 = vector.shape_cast %21 : vector<32x128xf32> to vector<2x16x128xf32>
    %23 = vector.extract_strided_slice %22 {offsets = [0, 0, 0], sizes = [2, 15, 128], strides = [1, 1, 1]} : vector<2x16x128xf32> to vector<2x15x128xf32>
    %c0_24 = arith.constant 0 : index
    %c1_25 = arith.constant 1 : index
    %c0_26 = arith.constant 0 : index
    %24 = vector.load %arg6[%c0_24, %c1_25, %c0_26] : memref<2x16x384xf32, #tpu.memory_space<vmem>>, vector<2x15x128xf32>
    tpu.vector_store %arg6[%c0_24, %c1_25, %c0_26], %23 {strides = array<i32>} : memref<2x16x384xf32, #tpu.memory_space<vmem>>, vector<2x15x128xf32>,
    %c0_27 = arith.constant 0 : index
    %c0_28 = arith.constant 0 : index
    %c128_29 = arith.constant 128 : index
    %25 = vector.load %arg6[%c0_27, %c0_28, %c128_29] : memref<2x16x384xf32, #tpu.memory_space<vmem>>, vector<2x16x128xf32>
    tpu.vector_store %arg6[%c0_27, %c0_28, %c128_29], %22 {strides = array<i32>} : memref<2x16x384xf32, #tpu.memory_space<vmem>>, vector<2x16x128xf32>,
    %26 = vector.extract_strided_slice %22 {offsets = [0, 1, 0], sizes = [2, 15, 128], strides = [1, 1, 1]} : vector<2x16x128xf32> to vector<2x15x128xf32>
    %c0_30 = arith.constant 0 : index
    %c0_31 = arith.constant 0 : index
    %c256_32 = arith.constant 256 : index
    %27 = vector.load %arg6[%c0_30, %c0_31, %c256_32] : memref<2x16x384xf32, #tpu.memory_space<vmem>>, vector<2x15x128xf32>
    tpu.vector_store %arg6[%c0_30, %c0_31, %c256_32], %26 {strides = array<i32>} : memref<2x16x384xf32, #tpu.memory_space<vmem>>, vector<2x15x128xf32>,
    %c0_33 = arith.constant 0 : index
    %c0_34 = arith.constant 0 : index
    %c0_35 = arith.constant 0 : index
    %28 = vector.load %arg6[%c0_33, %c0_34, %c0_35] : memref<2x16x384xf32, #tpu.memory_space<vmem>>, vector<2x16x384xf32>
    %29 = vector.shape_cast %28 : vector<2x16x384xf32> to vector<32x384xf32>
    %30 = arith.truncf %29 : vector<32x384xf32> to vector<32x384xbf16>
    %c1_36 = arith.constant 1 : index
    %c0_37 = arith.constant 0 : index
    %c0_38 = arith.constant 0 : index
    %31 = vector.load %arg2[%c1_36, %c0_37, %c0_38] : memref<3x384x128xbf16, #tpu.memory_space<vmem>>, vector<1x384x128xbf16>
    %32 = vector.shape_cast %31 : vector<1x384x128xbf16> to vector<384x128xbf16>
    %cst_39 = arith.constant dense<0.000000e+00> : vector<32x128xf32>
    %33 = tpu.matmul %30, %32, %cst_39 {dimension_numbers = #tpu.dot_dimension_numbers<[1], [0], [0], [1], [0, 0, 1, 1], [], []>} : vector<32x384xbf16>, vector<384x128xbf16>, vector<32x128xf32> -> vector<32x128xf32>
    %34 = vector.extract_strided_slice %0 {offsets = [1, 0], sizes = [1, 128], strides = [1, 1]} : vector<4x128xf32> to vector<1x128xf32>
    %35 = vector.broadcast %34 : vector<1x128xf32> to vector<32x128xf32>
    %36 = arith.addf %33, %35 : vector<32x128xf32>
    %cst_40 = arith.constant 0.000000e+00 : f32
    %37 = vector.broadcast %cst_40 : f32 to vector<32x128xf32>
    %38 = arith.maximumf %36, %37 : vector<32x128xf32>
    %39 = vector.shape_cast %38 : vector<32x128xf32> to vector<2x16x128xf32>
    %40 = vector.extract_strided_slice %39 {offsets = [0, 0, 0], sizes = [2, 15, 128], strides = [1, 1, 1]} : vector<2x16x128xf32> to vector<2x15x128xf32>
    %c0_41 = arith.constant 0 : index
    %c1_42 = arith.constant 1 : index
    %c0_43 = arith.constant 0 : index
    %41 = vector.load %arg6[%c0_41, %c1_42, %c0_43] : memref<2x16x384xf32, #tpu.memory_space<vmem>>, vector<2x15x128xf32>
    tpu.vector_store %arg6[%c0_41, %c1_42, %c0_43], %40 {strides = array<i32>} : memref<2x16x384xf32, #tpu.memory_space<vmem>>, vector<2x15x128xf32>,
    %c0_44 = arith.constant 0 : index
    %c0_45 = arith.constant 0 : index
    %c128_46 = arith.constant 128 : index
    %42 = vector.load %arg6[%c0_44, %c0_45, %c128_46] : memref<2x16x384xf32, #tpu.memory_space<vmem>>, vector<2x16x128xf32>
    tpu.vector_store %arg6[%c0_44, %c0_45, %c128_46], %39 {strides = array<i32>} : memref<2x16x384xf32, #tpu.memory_space<vmem>>, vector<2x16x128xf32>,
    %43 = vector.extract_strided_slice %39 {offsets = [0, 1, 0], sizes = [2, 15, 128], strides = [1, 1, 1]} : vector<2x16x128xf32> to vector<2x15x128xf32>
    %c0_47 = arith.constant 0 : index
    %c0_48 = arith.constant 0 : index
    %c256_49 = arith.constant 256 : index
    %44 = vector.load %arg6[%c0_47, %c0_48, %c256_49] : memref<2x16x384xf32, #tpu.memory_space<vmem>>, vector<2x15x128xf32>
    tpu.vector_store %arg6[%c0_47, %c0_48, %c256_49], %43 {strides = array<i32>} : memref<2x16x384xf32, #tpu.memory_space<vmem>>, vector<2x15x128xf32>,
    %c0_50 = arith.constant 0 : index
    %c0_51 = arith.constant 0 : index
    %c0_52 = arith.constant 0 : index
    %45 = vector.load %arg6[%c0_50, %c0_51, %c0_52] : memref<2x16x384xf32, #tpu.memory_space<vmem>>, vector<2x16x384xf32>
    %46 = vector.shape_cast %45 : vector<2x16x384xf32> to vector<32x384xf32>
    %47 = arith.truncf %46 : vector<32x384xf32> to vector<32x384xbf16>
    %c2 = arith.constant 2 : index
    %c0_53 = arith.constant 0 : index
    %c0_54 = arith.constant 0 : index
    %48 = vector.load %arg2[%c2, %c0_53, %c0_54] : memref<3x384x128xbf16, #tpu.memory_space<vmem>>, vector<1x384x128xbf16>
    %49 = vector.shape_cast %48 : vector<1x384x128xbf16> to vector<384x128xbf16>
    %cst_55 = arith.constant dense<0.000000e+00> : vector<32x128xf32>
    %50 = tpu.matmul %47, %49, %cst_55 {dimension_numbers = #tpu.dot_dimension_numbers<[1], [0], [0], [1], [0, 0, 1, 1], [], []>} : vector<32x384xbf16>, vector<384x128xbf16>, vector<32x128xf32> -> vector<32x128xf32>
    %51 = vector.extract_strided_slice %0 {offsets = [2, 0], sizes = [1, 128], strides = [1, 1]} : vector<4x128xf32> to vector<1x128xf32>
    %52 = vector.broadcast %51 : vector<1x128xf32> to vector<32x128xf32>
    %53 = arith.addf %50, %52 : vector<32x128xf32>
    %54 = arith.addf %53, %21 : vector<32x128xf32>
    %cst_56 = arith.constant 0.000000e+00 : f32
    %55 = vector.broadcast %cst_56 : f32 to vector<32x128xf32>
    %56 = arith.maximumf %54, %55 : vector<32x128xf32>
    %57 = vector.shape_cast %56 : vector<32x128xf32> to vector<2x16x128xf32>
    %cst_57 = arith.constant dense<0.000000e+00> : vector<2x128xf32>
    %58 = vector.multi_reduction <add>, %57, %cst_57 [1] : vector<2x16x128xf32> to vector<2x128xf32>
    %c0_58 = arith.constant 0 : index
    %c0_59 = arith.constant 0 : index
    %59 = vector.load %arg4[%c0_58, %c0_59] : memref<128x128xf32, #tpu.memory_space<vmem>>, vector<128x128xf32>
    %cst_60 = arith.constant dense<0.000000e+00> : vector<2x128xf32>
    %60 = tpu.matmul %58, %59, %cst_60 {dimension_numbers = #tpu.dot_dimension_numbers<[1], [0], [0], [1], [0, 0, 1, 1], [], []>} : vector<2x128xf32>, vector<128x128xf32>, vector<2x128xf32> -> vector<2x128xf32>
    %61 = vector.extract_strided_slice %0 {offsets = [3, 0], sizes = [1, 128], strides = [1, 1]} : vector<4x128xf32> to vector<1x128xf32>
    %62 = vector.broadcast %61 : vector<1x128xf32> to vector<2x128xf32>
    %63 = arith.addf %60, %62 : vector<2x128xf32>
    %c0_61 = arith.constant 0 : index
    %c0_62 = arith.constant 0 : index
    %64 = vector.load %arg5[%c0_61, %c0_62] : memref<2x128xf32, #tpu.memory_space<vmem>>, vector<2x128xf32>
    tpu.vector_store %arg5[%c0_61, %c0_62], %63 {strides = array<i32>} : memref<2x128xf32, #tpu.memory_space<vmem>>, vector<2x128xf32>,
    return
  }
  func.func @transform_0(%arg0: i32) -> (i32, i32, i32) {
    %c0_i32 = arith.constant 0 : i32
    %c0_i32_0 = arith.constant 0 : i32
    %c0_i32_1 = arith.constant 0 : i32
    return %arg0, %c0_i32, %c0_i32_0 : i32, i32, i32
  }
  func.func @transform_1(%arg0: i32) -> (i32, i32, i32) {
    %c0_i32 = arith.constant 0 : i32
    %c0_i32_0 = arith.constant 0 : i32
    %c0_i32_1 = arith.constant 0 : i32
    %c0_i32_2 = arith.constant 0 : i32
    return %c0_i32, %c0_i32_0, %c0_i32_1 : i32, i32, i32
  }
  func.func @transform_2(%arg0: i32) -> (i32, i32) {
    %c0_i32 = arith.constant 0 : i32
    %c0_i32_0 = arith.constant 0 : i32
    %c0_i32_1 = arith.constant 0 : i32
    return %c0_i32, %c0_i32_0 : i32, i32
  }
  func.func @transform_3(%arg0: i32) -> (i32, i32) {
    %c0_i32 = arith.constant 0 : i32
    %c0_i32_0 = arith.constant 0 : i32
    %c0_i32_1 = arith.constant 0 : i32
    return %c0_i32, %c0_i32_0 : i32, i32
  }
  func.func @transform_4(%arg0: i32) -> (i32, i32) {
    %c0_i32 = arith.constant 0 : i32
    %c0_i32_0 = arith.constant 0 : i32
    return %arg0, %c0_i32 : i32, i32
  }
}

</mosaic_0001>

<llo_original>
// kernel: tpu_custom_call.1
$region0: #{tpu_custom_call.1}
  #allocation0 [shape = 'u32[]', space=smem, size = 0x4, offset = 0x4, fixed_abs, tag = 'smem constant byte address 0x4 - core index']
  #allocation1 [shape = 'u32[144,128]{1,0:T(1,128)}', space=vmem, size = 0x12000, scoped, tag = 'internal scratch']
  #allocation2 [shape = 'f32[2,16,384]{2,1,0:T(8,128)}', space=vmem, size = 0xc000, scoped, tag = 'scratch operand']
  %s0 = inlined_call_operand.hbm [shape: f32[2,16,128], index: 0, kind: input, shape index: {}]
  %s1 = inlined_call_operand.hbm [shape: bf16[3,384,128], index: 1, kind: input, shape index: {}]
  %s2 = inlined_call_operand.hbm [shape: f32[4,128], index: 2, kind: input, shape index: {}]
  %s3 = inlined_call_operand.hbm [shape: f32[128,128], index: 3, kind: input, shape index: {}]
  %s4 = inlined_call_operand.hbm [shape: f32[2,128], index: 4, kind: output, shape index: {}]
  %s5 = sld [smem:[#allocation0]]
  $region42: #{tpu_custom_call.1} parent=0
    _
  %s7 = ssub.s32 1, %s5
  %s8 = scalar_select 0, %s7, %s5
  $region1: #{tpu_custom_call.1} parent=0
    #allocation3 [shape = 'u8[16384]{0}', space=vmem, size = 0x4000, scoped, tag = 'input window, operand 0, single buffered']
    #allocation4 [shape = 's32[1]{0}', space=sflag, size = 0x4, scoped, tag = 'scoped memory for tpu_custom_call.1']
    #allocation5 [shape = 's32[1]{0}', space=sflag, size = 0x4, scoped, tag = 'scoped memory for tpu_custom_call.1']
    #allocation6 [shape = 'u8[294912]{0}', space=vmem, size = 0x48000, scoped, tag = 'input window, operand 1, single buffered']
    #allocation7 [shape = 's32[1]{0}', space=sflag, size = 0x4, scoped, tag = 'scoped memory for tpu_custom_call.1']
    #allocation8 [shape = 'u8[2048]{0}', space=vmem, size = 0x800, scoped, tag = 'input window, operand 2, single buffered']
    #allocation9 [shape = 'u8[65536]{0}', space=vmem, size = 0x10000, scoped, tag = 'input window, operand 3, single buffered']
    #allocation10 [shape = 's32[1]{0}', space=sflag, size = 0x4, scoped, tag = 'scoped memory for tpu_custom_call.1']
    #allocation11 [shape = 'u8[1024]{0}', space=vmem, size = 0x400, scoped, tag = 'output window, operand 0, single buffered']
    %9 = vsyncpa [#allocation4], 0
    %10 = vsyncpa [#allocation7], 0
    %11 = vsyncpa [#allocation10], 0
    %12 = vsyncpa [#allocation5], 0
    // Predicated region
    $region2: #{tpu_custom_call.1} parent=1 // pred_check
      _
    $region3: #{tpu_custom_call.1} parent=1 // pred_check_branch
      %14 = sbr.rel (0) target = $region5
    $region4: #{tpu_custom_call.1} parent=1 // pred_region
      %s16 = ssub.s32 512, 512
      %17 = vsyncadd [#allocation4], %s16
      %s18 = sshll.u32 [#allocation3], 4
      %s19 = int_to_ptr.vmem [resolvable:$true] %s18
      %24 = dma.hbm_to_vmem [thread:$0]  %s0, 512, %s19, [#allocation4], 128, 128, 8
    $region5: #{tpu_custom_call.1} parent=1 // pred_fallthru
      _
    // Predicated region
    $region6: #{tpu_custom_call.1} parent=1 // pred_check
      _
    $region7: #{tpu_custom_call.1} parent=1 // pred_check_branch
      %26 = sbr.rel (0) target = $region9
    $region8: #{tpu_custom_call.1} parent=1 // pred_region
      %s28 = ssub.s32 9216, 9216
      %29 = vsyncadd [#allocation7], %s28
      %s30 = sshll.u32 [#allocation6], 4
      %s31 = int_to_ptr.vmem [resolvable:$true] %s30
      %36 = dma.hbm_to_vmem [thread:$0]  %s1, 9216, %s31, [#allocation7], 64, 64, 4
    $region9: #{tpu_custom_call.1} parent=1 // pred_fallthru
      _
    // Predicated region
    $region10: #{tpu_custom_call.1} parent=1 // pred_check
      _
    $region11: #{tpu_custom_call.1} parent=1 // pred_check_branch
      %38 = sbr.rel (0) target = $region13
    $region12: #{tpu_custom_call.1} parent=1 // pred_region
      %s40 = ssub.s32 64, 64
      %41 = vsyncadd [#allocation7], %s40
      %s43 = sshll.u32 [#allocation8], 4
      %s44 = int_to_ptr.vmem [resolvable:$true] %s43
      %46 = dma.hbm_to_vmem [thread:$0]  %s2, 64, %s44, [#allocation7]
    $region13: #{tpu_custom_call.1} parent=1 // pred_fallthru
      _
    // Predicated region
    $region14: #{tpu_custom_call.1} parent=1 // pred_check
      _
    $region15: #{tpu_custom_call.1} parent=1 // pred_check_branch
      %48 = sbr.rel (0) target = $region17
    $region16: #{tpu_custom_call.1} parent=1 // pred_region
      %s50 = ssub.s32 2048, 2048
      %51 = vsyncadd [#allocation10], %s50
      %s52 = sshll.u32 [#allocation9], 4
      %s53 = int_to_ptr.vmem [resolvable:$true] %s52
      %58 = dma.hbm_to_vmem [thread:$0]  %s3, 2048, %s53, [#allocation10], 128, 128, 8
    $region17: #{tpu_custom_call.1} parent=1 // pred_fallthru
      _
    // Predicated region
    $region18: #{tpu_custom_call.1} parent=1 // pred_check
      _
    $region19: #{tpu_custom_call.1} parent=1 // pred_check_branch
      %60 = sbr.rel (0) target = $region21
    $region20: #{tpu_custom_call.1} parent=1 // pred_region
      %61 = dma.done [#allocation4], 512
    $region21: #{tpu_custom_call.1} parent=1 // pred_fallthru
      _
    // Predicated region
    $region22: #{tpu_custom_call.1} parent=1 // pred_check
      _
    $region23: #{tpu_custom_call.1} parent=1 // pred_check_branch
      %63 = sbr.rel (0) target = $region25
    $region24: #{tpu_custom_call.1} parent=1 // pred_region
      %64 = dma.done [#allocation7], 9216
    $region25: #{tpu_custom_call.1} parent=1 // pred_fallthru
      _
    // Predicated region
    $region26: #{tpu_custom_call.1} parent=1 // pred_check
      _
    $region27: #{tpu_custom_call.1} parent=1 // pred_check_branch
      %66 = sbr.rel (0) target = $region29
    $region28: #{tpu_custom_call.1} parent=1 // pred_region
      %67 = dma.done [#allocation7], 64
    $region29: #{tpu_custom_call.1} parent=1 // pred_fallthru
      _
    // Predicated region
    $region30: #{tpu_custom_call.1} parent=1 // pred_check
      _
    $region31: #{tpu_custom_call.1} parent=1 // pred_check_branch
      %69 = sbr.rel (0) target = $region33
    $region32: #{tpu_custom_call.1} parent=1 // pred_region
      %70 = dma.done [#allocation10], 2048
    $region33: #{tpu_custom_call.1} parent=1 // pred_fallthru
      _
    %v72 = vld [vmem:[#allocation8] sm:$0xf]
    %73 = vst [vmem:[#allocation2] sm:$0x1] 0.0
    %74 = vst [vmem:[#allocation2 + $0x30] sm:$0x1] 0.0
    %75 = vst [vmem:[#allocation2 + $0x2f] sm:$0x1] 0.0
    %76 = vst [vmem:[#allocation2 + $0x5f] sm:$0x1] 0.0
    %v77 = vld [vmem:[#allocation3] sm:$0xff]
    %v78 = vld [vmem:[#allocation3 + $0x8] sm:$0xff]
    %v79 = vld [vmem:[#allocation3 + $0x10] sm:$0xff]
    %v80 = vld [vmem:[#allocation3 + $0x18] sm:$0xff]
    %vm85 = vcmask 1040384
    %v86 = vrot.slane %v77, 7
    %v87 = vrot.slane %v78, 7
    %v88 = vsel %vm85, %v86, %v87
    %v89 = vrot.slane %v79, 7
    %v90 = vrot.slane %v80, 7
    %v91 = vsel %vm85, %v89, %v90
    %96 = vst [vmem:[#allocation2] sm:$0xfe] %v86
    %97 = vst [vmem:[#allocation2 + $0x18] sm:$0xff] %v88
    %98 = vst [vmem:[#allocation2 + $0x30] sm:$0xfe] %v89
    %99 = vst [vmem:[#allocation2 + $0x48] sm:$0xff] %v91
    %100 = vst [vmem:[#allocation2 + $0x8] sm:$0xff] %v77
    %101 = vst [vmem:[#allocation2 + $0x20] sm:$0xff] %v78
    %102 = vst [vmem:[#allocation2 + $0x38] sm:$0xff] %v79
    %103 = vst [vmem:[#allocation2 + $0x50] sm:$0xff] %v80
    %vm104 = vcmask 1046528
    %v105 = vrot.slane %v77, 1
    %v106 = vrot.slane %v78, 1
    %v107 = vsel %vm104, %v105, %v106
    %v108 = vrot.slane %v79, 1
    %v109 = vrot.slane %v80, 1
    %v110 = vsel %vm104, %v108, %v109
    %115 = vst [vmem:[#allocation2 + $0x10] sm:$0xff] %v107
    %116 = vst [vmem:[#allocation2 + $0x28] sm:$0x7f] %v106
    %117 = vst [vmem:[#allocation2 + $0x40] sm:$0xff] %v110
    %118 = vst [vmem:[#allocation2 + $0x58] sm:$0x7f] %v109
    %v119 = vld [vmem:[#allocation2] sm:$0xff]
    %v120 = vld [vmem:[#allocation2 + $0x8] sm:$0xff]
    %v121 = vld [vmem:[#allocation2 + $0x10] sm:$0xff]
    %v122 = vld [vmem:[#allocation2 + $0x18] sm:$0xff]
    %v123 = vld [vmem:[#allocation2 + $0x20] sm:$0xff]
    %v124 = vld [vmem:[#allocation2 + $0x28] sm:$0xff]
    %v125 = vld [vmem:[#allocation2 + $0x30] sm:$0xff]
    %v126 = vld [vmem:[#allocation2 + $0x38] sm:$0xff]
    %v127 = vld [vmem:[#allocation2 + $0x40] sm:$0xff]
    %v128 = vld [vmem:[#allocation2 + $0x48] sm:$0xff]
    %v129 = vld [vmem:[#allocation2 + $0x50] sm:$0xff]
    %v130 = vld [vmem:[#allocation2 + $0x58] sm:$0xff]
    %v131 = vpack.c.bf16 %v122, %v119
    %v132 = vpack.c.bf16 %v123, %v120
    %v133 = vpack.c.bf16 %v124, %v121
    %v134 = vpack.c.bf16 %v128, %v125
    %v135 = vpack.c.bf16 %v129, %v126
    %v136 = vpack.c.bf16 %v130, %v127
    %v137 = vld [vmem:[#allocation6] sm:$0xf]
    %v138 = vld [vmem:[#allocation6 + $0x4] sm:$0xf]
    %v139 = vld [vmem:[#allocation6 + $0x8] sm:$0xf]
    %v140 = vld [vmem:[#allocation6 + $0xc] sm:$0xf]
    %v141 = vld [vmem:[#allocation6 + $0x10] sm:$0xf]
    %v142 = vld [vmem:[#allocation6 + $0x14] sm:$0xf]
    %v143 = vld [vmem:[#allocation6 + $0x18] sm:$0xf]
    %v144 = vld [vmem:[#allocation6 + $0x1c] sm:$0xf]
    %v145 = vld [vmem:[#allocation6 + $0x20] sm:$0xf]
    %v146 = vld [vmem:[#allocation6 + $0x24] sm:$0xf]
    %v147 = vld [vmem:[#allocation6 + $0x28] sm:$0xf]
    %v148 = vld [vmem:[#allocation6 + $0x2c] sm:$0xf]
    %v149 = vld [vmem:[#allocation6 + $0x30] sm:$0xf]
    %v150 = vld [vmem:[#allocation6 + $0x34] sm:$0xf]
    %v151 = vld [vmem:[#allocation6 + $0x38] sm:$0xf]
    %v152 = vld [vmem:[#allocation6 + $0x3c] sm:$0xf]
    %v153 = vld [vmem:[#allocation6 + $0x40] sm:$0xf]
    %v154 = vld [vmem:[#allocation6 + $0x44] sm:$0xf]
    %v155 = vld [vmem:[#allocation6 + $0x48] sm:$0xf]
    %v156 = vld [vmem:[#allocation6 + $0x4c] sm:$0xf]
    %v157 = vld [vmem:[#allocation6 + $0x50] sm:$0xf]
    %v158 = vld [vmem:[#allocation6 + $0x54] sm:$0xf]
    %v159 = vld [vmem:[#allocation6 + $0x58] sm:$0xf]
    %v160 = vld [vmem:[#allocation6 + $0x5c] sm:$0xf]
    %v161 = vld [vmem:[#allocation6 + $0x60] sm:$0xf]
    %v162 = vld [vmem:[#allocation6 + $0x64] sm:$0xf]
    %v163 = vld [vmem:[#allocation6 + $0x68] sm:$0xf]
    %v164 = vld [vmem:[#allocation6 + $0x6c] sm:$0xf]
    %v165 = vld [vmem:[#allocation6 + $0x70] sm:$0xf]
    %v166 = vld [vmem:[#allocation6 + $0x74] sm:$0xf]
    %v167 = vld [vmem:[#allocation6 + $0x78] sm:$0xf]
    %v168 = vld [vmem:[#allocation6 + $0x7c] sm:$0xf]
    %v169 = vld [vmem:[#allocation6 + $0x80] sm:$0xf]
    %v170 = vld [vmem:[#allocation6 + $0x84] sm:$0xf]
    %v171 = vld [vmem:[#allocation6 + $0x88] sm:$0xf]
    %v172 = vld [vmem:[#allocation6 + $0x8c] sm:$0xf]
    %v173 = vld [vmem:[#allocation6 + $0x90] sm:$0xf]
    %v174 = vld [vmem:[#allocation6 + $0x94] sm:$0xf]
    %v175 = vld [vmem:[#allocation6 + $0x98] sm:$0xf]
    %v176 = vld [vmem:[#allocation6 + $0x9c] sm:$0xf]
    %v177 = vld [vmem:[#allocation6 + $0xa0] sm:$0xf]
    %v178 = vld [vmem:[#allocation6 + $0xa4] sm:$0xf]
    %v179 = vld [vmem:[#allocation6 + $0xa8] sm:$0xf]
    %v180 = vld [vmem:[#allocation6 + $0xac] sm:$0xf]
    %v181 = vld [vmem:[#allocation6 + $0xb0] sm:$0xf]
    %v182 = vld [vmem:[#allocation6 + $0xb4] sm:$0xf]
    %v183 = vld [vmem:[#allocation6 + $0xb8] sm:$0xf]
    %v184 = vld [vmem:[#allocation6 + $0xbc] sm:$0xf]
    %v185 = vlaneseq
    %v186 = vshrl.u32 %v185, 7
    %v187 = vsub.s32 0, %v186
    %v188 = vrot.slane %v72, %v187
    %v237 = vunpack.c.l.b16 %v137
    %v238 = vunpack.c.l.b16 %v138
    %v239 = vunpack.c.l.b16 %v139
    %v240 = vunpack.c.l.b16 %v140
    %v241 = vunpack.c.l.b16 %v141
    %v242 = vunpack.c.l.b16 %v142
    %v243 = vunpack.c.l.b16 %v143
    %v244 = vunpack.c.l.b16 %v144
    %v245 = vunpack.c.l.b16 %v145
    %v246 = vunpack.c.l.b16 %v146
    %v247 = vunpack.c.l.b16 %v147
    %v248 = vunpack.c.l.b16 %v148
    %v249 = vunpack.c.l.b16 %v149
    %v250 = vunpack.c.l.b16 %v150
    %v251 = vunpack.c.l.b16 %v151
    %v252 = vunpack.c.l.b16 %v152
    %v253 = vunpack.c.l.b16 %v153
    %v254 = vunpack.c.l.b16 %v154
    %v255 = vunpack.c.l.b16 %v155
    %v256 = vunpack.c.l.b16 %v156
    %v257 = vunpack.c.l.b16 %v157
    %v258 = vunpack.c.l.b16 %v158
    %v259 = vunpack.c.l.b16 %v159
    %v260 = vunpack.c.l.b16 %v160
    %v261 = vunpack.c.l.b16 %v161
    %v262 = vunpack.c.l.b16 %v162
    %v263 = vunpack.c.l.b16 %v163
    %v264 = vunpack.c.l.b16 %v164
    %v265 = vunpack.c.l.b16 %v165
    %v266 = vunpack.c.l.b16 %v166
    %v267 = vunpack.c.l.b16 %v167
    %v268 = vunpack.c.l.b16 %v168
    %v269 = vunpack.c.l.b16 %v169
    %v270 = vunpack.c.l.b16 %v170
    %v271 = vunpack.c.l.b16 %v171
    %v272 = vunpack.c.l.b16 %v172
    %v273 = vunpack.c.l.b16 %v173
    %v274 = vunpack.c.l.b16 %v174
    %v275 = vunpack.c.l.b16 %v175
    %v276 = vunpack.c.l.b16 %v176
    %v277 = vunpack.c.l.b16 %v177
    %v278 = vunpack.c.l.b16 %v178
    %v279 = vunpack.c.l.b16 %v179
    %v280 = vunpack.c.l.b16 %v180
    %v281 = vunpack.c.l.b16 %v181
    %v282 = vunpack.c.l.b16 %v182
    %v283 = vunpack.c.l.b16 %v183
    %v284 = vunpack.c.l.b16 %v184
    %v285 = vpack.c.b16 %v238, %v237
    %v286 = vpack.c.b16 %v240, %v239
    %v287 = vpack.c.b16 %v242, %v241
    %v288 = vpack.c.b16 %v244, %v243
    %v289 = vpack.c.b16 %v246, %v245
    %v290 = vpack.c.b16 %v248, %v247
    %v291 = vpack.c.b16 %v250, %v249
    %v292 = vpack.c.b16 %v252, %v251
    %v293 = vpack.c.b16 %v254, %v253
    %v294 = vpack.c.b16 %v256, %v255
    %v295 = vpack.c.b16 %v258, %v257
    %v296 = vpack.c.b16 %v260, %v259
    %v297 = vpack.c.b16 %v262, %v261
    %v298 = vpack.c.b16 %v264, %v263
    %v299 = vpack.c.b16 %v266, %v265
    %v300 = vpack.c.b16 %v268, %v267
    %v301 = vpack.c.b16 %v270, %v269
    %v302 = vpack.c.b16 %v272, %v271
    %v303 = vpack.c.b16 %v274, %v273
    %v304 = vpack.c.b16 %v276, %v275
    %v305 = vpack.c.b16 %v278, %v277
    %v306 = vpack.c.b16 %v280, %v279
    %v307 = vpack.c.b16 %v282, %v281
    %v308 = vpack.c.b16 %v284, %v283
    %333 = vmatprep.subr.bf16.mxu0 0
    %334 = vmatpush1.bf16.msra.mxu0 %v292
    %335 = vmatprep.subr.bf16.mxu0 0
    %336 = vmatpush1.bf16.msra.mxu0 %v291
    %337 = vmatprep.subr.bf16.mxu0 0
    %338 = vmatpush1.bf16.msra.mxu0 %v290
    %339 = vmatprep.subr.bf16.mxu0 0
    %340 = vmatpush1.bf16.msra.mxu0 %v289
    %341 = vmatprep.subr.bf16.mxu0 0
    %342 = vmatpush1.bf16.msra.mxu0 %v288
    %343 = vmatprep.subr.bf16.mxu0 0
    %344 = vmatpush1.bf16.msra.mxu0 %v287
    %345 = vmatprep.subr.bf16.mxu0 0
    %346 = vmatpush1.bf16.msra.mxu0 %v286
    %347 = vmatprep.subr.bf16.mxu0 0
    %348 = vmatpush1.bf16.msra.mxu0 %v285
    %349 = vmatprep.subr.bf16.mxu0 0
    %350 = vmatpush2.bf16.msra.mxu0 %v300
    %351 = vmatprep.subr.bf16.mxu0 0
    %352 = vmatpush2.bf16.msra.mxu0 %v299
    %353 = vmatprep.subr.bf16.mxu0 0
    %354 = vmatpush2.bf16.msra.mxu0 %v298
    %355 = vmatprep.subr.bf16.mxu0 0
    %356 = vmatpush2.bf16.msra.mxu0 %v297
    %357 = vmatprep.subr.bf16.mxu0 0
    %358 = vmatpush2.bf16.msra.mxu0 %v296
    %359 = vmatprep.subr.bf16.mxu0 0
    %360 = vmatpush2.bf16.msra.mxu0 %v295
    %361 = vmatprep.subr.bf16.mxu0 0
    %362 = vmatpush2.bf16.msra.mxu0 %v294
    %363 = vmatprep.subr.bf16.mxu0 0
    %364 = vmatpush2.bf16.msra.mxu0 %v293
    %365 = vmatprep.mubr.bf16.mxu0 %v132
    %366 = vmatmul.mubr.bf16.gmra.mxu0 %v131
    %v367 = vpop.f32.mrf.mxu0
    %v368 = vadd.f32 %v188, %v367
    %v369 = vpop.f32.mrf.mxu0
    %v370 = vpop.f32.mrf.mxu0
    %v371 = vadd.f32 %v188, %v370
    %v372 = vpop.f32.mrf.mxu0
    %373 = vmatprep.mubr.bf16.mxu0 %v135
    %374 = vmatmul.mubr.bf16.gmra.mxu0 %v134
    %v375 = vpop.f32.mrf.mxu0
    %v376 = vadd.f32 %v188, %v375
    %v377 = vpop.f32.mrf.mxu0
    %v378 = vpop.f32.mrf.mxu0
    %v379 = vadd.f32 %v188, %v378
    %v380 = vpop.f32.mrf.mxu0
    %381 = vdwg.mxu0
    %382 = vmatprep.subr.bf16.mxu0 0
    %383 = vmatpush1.bf16.msra.mxu0 %v308
    %384 = vmatprep.subr.bf16.mxu0 0
    %385 = vmatpush1.bf16.msra.mxu0 %v307
    %386 = vmatprep.subr.bf16.mxu0 0
    %387 = vmatpush1.bf16.msra.mxu0 %v306
    %388 = vmatprep.subr.bf16.mxu0 0
    %389 = vmatpush1.bf16.msra.mxu0 %v305
    %390 = vmatprep.subr.bf16.mxu0 0
    %391 = vmatpush1.bf16.msra.mxu0 %v304
    %392 = vmatprep.subr.bf16.mxu0 0
    %393 = vmatpush1.bf16.msra.mxu0 %v303
    %394 = vmatprep.subr.bf16.mxu0 0
    %395 = vmatpush1.bf16.msra.mxu0 %v302
    %396 = vmatprep.subr.bf16.mxu0 0
    %397 = vmatpush1.bf16.msra.mxu0 %v301
    %398 = vmatprep.subr.bf16.mxu0 0
    %399 = vmatpush2.bf16.msra.mxu0 0
    %400 = vmatprep.subr.bf16.mxu0 0
    %401 = vmatpush2.bf16.msra.mxu0 0
    %402 = vmatprep.subr.bf16.mxu0 0
    %403 = vmatpush2.bf16.msra.mxu0 0
    %404 = vmatprep.subr.bf16.mxu0 0
    %405 = vmatpush2.bf16.msra.mxu0 0
    %406 = vmatprep.subr.bf16.mxu0 0
    %407 = vmatpush2.bf16.msra.mxu0 0
    %408 = vmatprep.subr.bf16.mxu0 0
    %409 = vmatpush2.bf16.msra.mxu0 0
    %410 = vmatprep.subr.bf16.mxu0 0
    %411 = vmatpush2.bf16.msra.mxu0 0
    %412 = vmatprep.subr.bf16.mxu0 0
    %413 = vmatpush2.bf16.msra.mxu0 0
    %414 = vmatprep.mubr.bf16.mxu0 0
    %415 = vmatmul.mubr.bf16.gmra.mxu0 %v133
    %v416 = vpop.f32.mrf.mxu0
    %v417 = vadd.f32 %v368, %v416
    %v418 = vpop.f32.mrf.mxu0
    %v419 = vpop.f32.mrf.mxu0
    %v420 = vadd.f32 %v371, %v419
    %v421 = vpop.f32.mrf.mxu0
    %422 = vmatprep.mubr.bf16.mxu0 0
    %423 = vmatmul.mubr.bf16.gmra.mxu0 %v136
    %v424 = vpop.f32.mrf.mxu0
    %v425 = vadd.f32 %v376, %v424
    %v426 = vpop.f32.mrf.mxu0
    %v427 = vpop.f32.mrf.mxu0
    %v428 = vadd.f32 %v379, %v427
    %v429 = vpop.f32.mrf.mxu0
    %430 = vdwg.mxu0
    %v431 = vmax.f32 %v417, 0.0
    %v432 = vmax.f32 %v420, 0.0
    %v433 = vmax.f32 %v425, 0.0
    %v434 = vmax.f32 %v428, 0.0
    %v439 = vrot.slane %v431, 7
    %v440 = vrot.slane %v432, 7
    %v441 = vsel %vm85, %v439, %v440
    %v442 = vrot.slane %v433, 7
    %v443 = vrot.slane %v434, 7
    %v444 = vsel %vm85, %v442, %v443
    %449 = vst [vmem:[#allocation2] sm:$0xfe] %v439
    %450 = vst [vmem:[#allocation2 + $0x18] sm:$0xff] %v441
    %451 = vst [vmem:[#allocation2 + $0x30] sm:$0xfe] %v442
    %452 = vst [vmem:[#allocation2 + $0x48] sm:$0xff] %v444
    %453 = vst [vmem:[#allocation2 + $0x8] sm:$0xff] %v431
    %454 = vst [vmem:[#allocation2 + $0x20] sm:$0xff] %v432
    %455 = vst [vmem:[#allocation2 + $0x38] sm:$0xff] %v433
    %456 = vst [vmem:[#allocation2 + $0x50] sm:$0xff] %v434
    %v457 = vrot.slane %v431, 1
    %v458 = vrot.slane %v432, 1
    %v459 = vsel %vm104, %v457, %v458
    %v460 = vrot.slane %v433, 1
    %v461 = vrot.slane %v434, 1
    %v462 = vsel %vm104, %v460, %v461
    %467 = vst [vmem:[#allocation2 + $0x10] sm:$0xff] %v459
    %468 = vst [vmem:[#allocation2 + $0x28] sm:$0x7f] %v458
    %469 = vst [vmem:[#allocation2 + $0x40] sm:$0xff] %v462
    %470 = vst [vmem:[#allocation2 + $0x58] sm:$0x7f] %v461
    %v471 = vld [vmem:[#allocation2] sm:$0xff]
    %v472 = vld [vmem:[#allocation2 + $0x8] sm:$0xff]
    %v473 = vld [vmem:[#allocation2 + $0x10] sm:$0xff]
    %v474 = vld [vmem:[#allocation2 + $0x18] sm:$0xff]
    %v475 = vld [vmem:[#allocation2 + $0x20] sm:$0xff]
    %v476 = vld [vmem:[#allocation2 + $0x28] sm:$0xff]
    %v477 = vld [vmem:[#allocation2 + $0x30] sm:$0xff]
    %v478 = vld [vmem:[#allocation2 + $0x38] sm:$0xff]
    %v479 = vld [vmem:[#allocation2 + $0x40] sm:$0xff]
    %v480 = vld [vmem:[#allocation2 + $0x48] sm:$0xff]
    %v481 = vld [vmem:[#allocation2 + $0x50] sm:$0xff]
    %v482 = vld [vmem:[#allocation2 + $0x58] sm:$0xff]
    %v483 = vpack.c.bf16 %v474, %v471
    %v484 = vpack.c.bf16 %v475, %v472
    %v485 = vpack.c.bf16 %v476, %v473
    %v486 = vpack.c.bf16 %v480, %v477
    %v487 = vpack.c.bf16 %v481, %v478
    %v488 = vpack.c.bf16 %v482, %v479
    %s489 = scalar_lea.vmem [#allocation6], 192
    %v490 = vld [vmem:[%s489] sm:$0xf]
    %v491 = vld [vmem:[%s489 + $0x4] sm:$0xf]
    %v492 = vld [vmem:[%s489 + $0x8] sm:$0xf]
    %v493 = vld [vmem:[%s489 + $0xc] sm:$0xf]
    %v494 = vld [vmem:[%s489 + $0x10] sm:$0xf]
    %v495 = vld [vmem:[%s489 + $0x14] sm:$0xf]
    %v496 = vld [vmem:[%s489 + $0x18] sm:$0xf]
    %v497 = vld [vmem:[%s489 + $0x1c] sm:$0xf]
    %v498 = vld [vmem:[%s489 + $0x20] sm:$0xf]
    %v499 = vld [vmem:[%s489 + $0x24] sm:$0xf]
    %v500 = vld [vmem:[%s489 + $0x28] sm:$0xf]
    %v501 = vld [vmem:[%s489 + $0x2c] sm:$0xf]
    %v502 = vld [vmem:[%s489 + $0x30] sm:$0xf]
    %v503 = vld [vmem:[%s489 + $0x34] sm:$0xf]
    %v504 = vld [vmem:[%s489 + $0x38] sm:$0xf]
    %v505 = vld [vmem:[%s489 + $0x3c] sm:$0xf]
    %v506 = vld [vmem:[%s489 + $0x40] sm:$0xf]
    %v507 = vld [vmem:[%s489 + $0x44] sm:$0xf]
    %v508 = vld [vmem:[%s489 + $0x48] sm:$0xf]
    %v509 = vld [vmem:[%s489 + $0x4c] sm:$0xf]
    %v510 = vld [vmem:[%s489 + $0x50] sm:$0xf]
    %v511 = vld [vmem:[%s489 + $0x54] sm:$0xf]
    %v512 = vld [vmem:[%s489 + $0x58] sm:$0xf]
    %v513 = vld [vmem:[%s489 + $0x5c] sm:$0xf]
    %v514 = vld [vmem:[%s489 + $0x60] sm:$0xf]
    %v515 = vld [vmem:[%s489 + $0x64] sm:$0xf]
    %v516 = vld [vmem:[%s489 + $0x68] sm:$0xf]
    %v517 = vld [vmem:[%s489 + $0x6c] sm:$0xf]
    %v518 = vld [vmem:[%s489 + $0x70] sm:$0xf]
    %v519 = vld [vmem:[%s489 + $0x74] sm:$0xf]
    %v520 = vld [vmem:[%s489 + $0x78] sm:$0xf]
    %v521 = vld [vmem:[%s489 + $0x7c] sm:$0xf]
    %v522 = vld [vmem:[%s489 + $0x80] sm:$0xf]
    %v523 = vld [vmem:[%s489 + $0x84] sm:$0xf]
    %v524 = vld [vmem:[%s489 + $0x88] sm:$0xf]
    %v525 = vld [vmem:[%s489 + $0x8c] sm:$0xf]
    %v526 = vld [vmem:[%s489 + $0x90] sm:$0xf]
    %v527 = vld [vmem:[%s489 + $0x94] sm:$0xf]
    %v528 = vld [vmem:[%s489 + $0x98] sm:$0xf]
    %v529 = vld [vmem:[%s489 + $0x9c] sm:$0xf]
    %v530 = vld [vmem:[%s489 + $0xa0] sm:$0xf]
    %v531 = vld [vmem:[%s489 + $0xa4] sm:$0xf]
    %v532 = vld [vmem:[%s489 + $0xa8] sm:$0xf]
    %v533 = vld [vmem:[%s489 + $0xac] sm:$0xf]
    %v534 = vld [vmem:[%s489 + $0xb0] sm:$0xf]
    %v535 = vld [vmem:[%s489 + $0xb4] sm:$0xf]
    %v536 = vld [vmem:[%s489 + $0xb8] sm:$0xf]
    %v537 = vld [vmem:[%s489 + $0xbc] sm:$0xf]
    %v538 = vlaneseq
    %v539 = vshrl.u32 %v538, 7
    %v540 = vsub.s32 1, %v539
    %v541 = vrot.slane %v72, %v540
    %v590 = vunpack.c.l.b16 %v490
    %v591 = vunpack.c.l.b16 %v491
    %v592 = vunpack.c.l.b16 %v492
    %v593 = vunpack.c.l.b16 %v493
    %v594 = vunpack.c.l.b16 %v494
    %v595 = vunpack.c.l.b16 %v495
    %v596 = vunpack.c.l.b16 %v496
    %v597 = vunpack.c.l.b16 %v497
    %v598 = vunpack.c.l.b16 %v498
    %v599 = vunpack.c.l.b16 %v499
    %v600 = vunpack.c.l.b16 %v500
    %v601 = vunpack.c.l.b16 %v501
    %v602 = vunpack.c.l.b16 %v502
    %v603 = vunpack.c.l.b16 %v503
    %v604 = vunpack.c.l.b16 %v504
    %v605 = vunpack.c.l.b16 %v505
    %v606 = vunpack.c.l.b16 %v506
    %v607 = vunpack.c.l.b16 %v507
    %v608 = vunpack.c.l.b16 %v508
    %v609 = vunpack.c.l.b16 %v509
    %v610 = vunpack.c.l.b16 %v510
    %v611 = vunpack.c.l.b16 %v511
    %v612 = vunpack.c.l.b16 %v512
    %v613 = vunpack.c.l.b16 %v513
    %v614 = vunpack.c.l.b16 %v514
    %v615 = vunpack.c.l.b16 %v515
    %v616 = vunpack.c.l.b16 %v516
    %v617 = vunpack.c.l.b16 %v517
    %v618 = vunpack.c.l.b16 %v518
    %v619 = vunpack.c.l.b16 %v519
    %v620 = vunpack.c.l.b16 %v520
    %v621 = vunpack.c.l.b16 %v521
    %v622 = vunpack.c.l.b16 %v522
    %v623 = vunpack.c.l.b16 %v523
    %v624 = vunpack.c.l.b16 %v524
    %v625 = vunpack.c.l.b16 %v525
    %v626 = vunpack.c.l.b16 %v526
    %v627 = vunpack.c.l.b16 %v527
    %v628 = vunpack.c.l.b16 %v528
    %v629 = vunpack.c.l.b16 %v529
    %v630 = vunpack.c.l.b16 %v530
    %v631 = vunpack.c.l.b16 %v531
    %v632 = vunpack.c.l.b16 %v532
    %v633 = vunpack.c.l.b16 %v533
    %v634 = vunpack.c.l.b16 %v534
    %v635 = vunpack.c.l.b16 %v535
    %v636 = vunpack.c.l.b16 %v536
    %v637 = vunpack.c.l.b16 %v537
    %v638 = vpack.c.b16 %v591, %v590
    %v639 = vpack.c.b16 %v593, %v592
    %v640 = vpack.c.b16 %v595, %v594
    %v641 = vpack.c.b16 %v597, %v596
    %v642 = vpack.c.b16 %v599, %v598
    %v643 = vpack.c.b16 %v601, %v600
    %v644 = vpack.c.b16 %v603, %v602
    %v645 = vpack.c.b16 %v605, %v604
    %v646 = vpack.c.b16 %v607, %v606
    %v647 = vpack.c.b16 %v609, %v608
    %v648 = vpack.c.b16 %v611, %v610
    %v649 = vpack.c.b16 %v613, %v612
    %v650 = vpack.c.b16 %v615, %v614
    %v651 = vpack.c.b16 %v617, %v616
    %v652 = vpack.c.b16 %v619, %v618
    %v653 = vpack.c.b16 %v621, %v620
    %v654 = vpack.c.b16 %v623, %v622
    %v655 = vpack.c.b16 %v625, %v624
    %v656 = vpack.c.b16 %v627, %v626
    %v657 = vpack.c.b16 %v629, %v628
    %v658 = vpack.c.b16 %v631, %v630
    %v659 = vpack.c.b16 %v633, %v632
    %v660 = vpack.c.b16 %v635, %v634
    %v661 = vpack.c.b16 %v637, %v636
    %686 = vmatprep.subr.bf16.mxu0 0
    %687 = vmatpush1.bf16.msra.mxu0 %v645
    %688 = vmatprep.subr.bf16.mxu0 0
    %689 = vmatpush1.bf16.msra.mxu0 %v644
    %690 = vmatprep.subr.bf16.mxu0 0
    %691 = vmatpush1.bf16.msra.mxu0 %v643
    %692 = vmatprep.subr.bf16.mxu0 0
    %693 = vmatpush1.bf16.msra.mxu0 %v642
    %694 = vmatprep.subr.bf16.mxu0 0
    %695 = vmatpush1.bf16.msra.mxu0 %v641
    %696 = vmatprep.subr.bf16.mxu0 0
    %697 = vmatpush1.bf16.msra.mxu0 %v640
    %698 = vmatprep.subr.bf16.mxu0 0
    %699 = vmatpush1.bf16.msra.mxu0 %v639
    %700 = vmatprep.subr.bf16.mxu0 0
    %701 = vmatpush1.bf16.msra.mxu0 %v638
    %702 = vmatprep.subr.bf16.mxu0 0
    %703 = vmatpush2.bf16.msra.mxu0 %v653
    %704 = vmatprep.subr.bf16.mxu0 0
    %705 = vmatpush2.bf16.msra.mxu0 %v652
    %706 = vmatprep.subr.bf16.mxu0 0
    %707 = vmatpush2.bf16.msra.mxu0 %v651
    %708 = vmatprep.subr.bf16.mxu0 0
    %709 = vmatpush2.bf16.msra.mxu0 %v650
    %710 = vmatprep.subr.bf16.mxu0 0
    %711 = vmatpush2.bf16.msra.mxu0 %v649
    %712 = vmatprep.subr.bf16.mxu0 0
    %713 = vmatpush2.bf16.msra.mxu0 %v648
    %714 = vmatprep.subr.bf16.mxu0 0
    %715 = vmatpush2.bf16.msra.mxu0 %v647
    %716 = vmatprep.subr.bf16.mxu0 0
    %717 = vmatpush2.bf16.msra.mxu0 %v646
    %718 = vmatprep.mubr.bf16.mxu0 %v484
    %719 = vmatmul.mubr.bf16.gmra.mxu0 %v483
    %v720 = vpop.f32.mrf.mxu0
    %v721 = vadd.f32 %v541, %v720
    %v722 = vpop.f32.mrf.mxu0
    %v723 = vpop.f32.mrf.mxu0
    %v724 = vadd.f32 %v541, %v723
    %v725 = vpop.f32.mrf.mxu0
    %726 = vmatprep.mubr.bf16.mxu0 %v487
    %727 = vmatmul.mubr.bf16.gmra.mxu0 %v486
    %v728 = vpop.f32.mrf.mxu0
    %v729 = vadd.f32 %v541, %v728
    %v730 = vpop.f32.mrf.mxu0
    %v731 = vpop.f32.mrf.mxu0
    %v732 = vadd.f32 %v541, %v731
    %v733 = vpop.f32.mrf.mxu0
    %734 = vdwg.mxu0
    %735 = vmatprep.subr.bf16.mxu0 0
    %736 = vmatpush1.bf16.msra.mxu0 %v661
    %737 = vmatprep.subr.bf16.mxu0 0
    %738 = vmatpush1.bf16.msra.mxu0 %v660
    %739 = vmatprep.subr.bf16.mxu0 0
    %740 = vmatpush1.bf16.msra.mxu0 %v659
    %741 = vmatprep.subr.bf16.mxu0 0
    %742 = vmatpush1.bf16.msra.mxu0 %v658
    %743 = vmatprep.subr.bf16.mxu0 0
    %744 = vmatpush1.bf16.msra.mxu0 %v657
    %745 = vmatprep.subr.bf16.mxu0 0
    %746 = vmatpush1.bf16.msra.mxu0 %v656
    %747 = vmatprep.subr.bf16.mxu0 0
    %748 = vmatpush1.bf16.msra.mxu0 %v655
    %749 = vmatprep.subr.bf16.mxu0 0
    %750 = vmatpush1.bf16.msra.mxu0 %v654
    %751 = vmatprep.subr.bf16.mxu0 0
    %752 = vmatpush2.bf16.msra.mxu0 0
    %753 = vmatprep.subr.bf16.mxu0 0
    %754 = vmatpush2.bf16.msra.mxu0 0
    %755 = vmatprep.subr.bf16.mxu0 0
    %756 = vmatpush2.bf16.msra.mxu0 0
    %757 = vmatprep.subr.bf16.mxu0 0
    %758 = vmatpush2.bf16.msra.mxu0 0
    %759 = vmatprep.subr.bf16.mxu0 0
    %760 = vmatpush2.bf16.msra.mxu0 0
    %761 = vmatprep.subr.bf16.mxu0 0
    %762 = vmatpush2.bf16.msra.mxu0 0
    %763 = vmatprep.subr.bf16.mxu0 0
    %764 = vmatpush2.bf16.msra.mxu0 0
    %765 = vmatprep.subr.bf16.mxu0 0
    %766 = vmatpush2.bf16.msra.mxu0 0
    %767 = vmatprep.mubr.bf16.mxu0 0
    %768 = vmatmul.mubr.bf16.gmra.mxu0 %v485
    %v769 = vpop.f32.mrf.mxu0
    %v770 = vadd.f32 %v721, %v769
    %v771 = vpop.f32.mrf.mxu0
    %v772 = vpop.f32.mrf.mxu0
    %v773 = vadd.f32 %v724, %v772
    %v774 = vpop.f32.mrf.mxu0
    %775 = vmatprep.mubr.bf16.mxu0 0
    %776 = vmatmul.mubr.bf16.gmra.mxu0 %v488
    %v777 = vpop.f32.mrf.mxu0
    %v778 = vadd.f32 %v729, %v777
    %v779 = vpop.f32.mrf.mxu0
    %v780 = vpop.f32.mrf.mxu0
    %v781 = vadd.f32 %v732, %v780
    %v782 = vpop.f32.mrf.mxu0
    %783 = vdwg.mxu0
    %v784 = vmax.f32 %v770, 0.0
    %v785 = vmax.f32 %v773, 0.0
    %v786 = vmax.f32 %v778, 0.0
    %v787 = vmax.f32 %v781, 0.0
    %v792 = vrot.slane %v784, 7
    %v793 = vrot.slane %v785, 7
    %v794 = vsel %vm85, %v792, %v793
    %v795 = vrot.slane %v786, 7
    %v796 = vrot.slane %v787, 7
    %v797 = vsel %vm85, %v795, %v796
    %802 = vst [vmem:[#allocation2] sm:$0xfe] %v792
    %803 = vst [vmem:[#allocation2 + $0x18] sm:$0xff] %v794
    %804 = vst [vmem:[#allocation2 + $0x30] sm:$0xfe] %v795
    %805 = vst [vmem:[#allocation2 + $0x48] sm:$0xff] %v797
    %806 = vst [vmem:[#allocation2 + $0x8] sm:$0xff] %v784
    %807 = vst [vmem:[#allocation2 + $0x20] sm:$0xff] %v785
    %808 = vst [vmem:[#allocation2 + $0x38] sm:$0xff] %v786
    %809 = vst [vmem:[#allocation2 + $0x50] sm:$0xff] %v787
    %v810 = vrot.slane %v784, 1
    %v811 = vrot.slane %v785, 1
    %v812 = vsel %vm104, %v810, %v811
    %v813 = vrot.slane %v786, 1
    %v814 = vrot.slane %v787, 1
    %v815 = vsel %vm104, %v813, %v814
    %820 = vst [vmem:[#allocation2 + $0x10] sm:$0xff] %v812
    %821 = vst [vmem:[#allocation2 + $0x28] sm:$0x7f] %v811
    %822 = vst [vmem:[#allocation2 + $0x40] sm:$0xff] %v815
    %823 = vst [vmem:[#allocation2 + $0x58] sm:$0x7f] %v814
    %v824 = vld [vmem:[#allocation2] sm:$0xff]
    %v825 = vld [vmem:[#allocation2 + $0x8] sm:$0xff]
    %v826 = vld [vmem:[#allocation2 + $0x10] sm:$0xff]
    %v827 = vld [vmem:[#allocation2 + $0x18] sm:$0xff]
    %v828 = vld [vmem:[#allocation2 + $0x20] sm:$0xff]
    %v829 = vld [vmem:[#allocation2 + $0x28] sm:$0xff]
    %v830 = vld [vmem:[#allocation2 + $0x30] sm:$0xff]
    %v831 = vld [vmem:[#allocation2 + $0x38] sm:$0xff]
    %v832 = vld [vmem:[#allocation2 + $0x40] sm:$0xff]
    %v833 = vld [vmem:[#allocation2 + $0x48] sm:$0xff]
    %v834 = vld [vmem:[#allocation2 + $0x50] sm:$0xff]
    %v835 = vld [vmem:[#allocation2 + $0x58] sm:$0xff]
    %v836 = vpack.c.bf16 %v827, %v824
    %v837 = vpack.c.bf16 %v828, %v825
    %v838 = vpack.c.bf16 %v829, %v826
    %v839 = vpack.c.bf16 %v833, %v830
    %v840 = vpack.c.bf16 %v834, %v831
    %v841 = vpack.c.bf16 %v835, %v832
    %s842 = scalar_lea.vmem [#allocation6], 384
    %v843 = vld [vmem:[%s842] sm:$0xf]
    %v844 = vld [vmem:[%s842 + $0x4] sm:$0xf]
    %v845 = vld [vmem:[%s842 + $0x8] sm:$0xf]
    %v846 = vld [vmem:[%s842 + $0xc] sm:$0xf]
    %v847 = vld [vmem:[%s842 + $0x10] sm:$0xf]
    %v848 = vld [vmem:[%s842 + $0x14] sm:$0xf]
    %v849 = vld [vmem:[%s842 + $0x18] sm:$0xf]
    %v850 = vld [vmem:[%s842 + $0x1c] sm:$0xf]
    %v851 = vld [vmem:[%s842 + $0x20] sm:$0xf]
    %v852 = vld [vmem:[%s842 + $0x24] sm:$0xf]
    %v853 = vld [vmem:[%s842 + $0x28] sm:$0xf]
    %v854 = vld [vmem:[%s842 + $0x2c] sm:$0xf]
    %v855 = vld [vmem:[%s842 + $0x30] sm:$0xf]
    %v856 = vld [vmem:[%s842 + $0x34] sm:$0xf]
    %v857 = vld [vmem:[%s842 + $0x38] sm:$0xf]
    %v858 = vld [vmem:[%s842 + $0x3c] sm:$0xf]
    %v859 = vld [vmem:[%s842 + $0x40] sm:$0xf]
    %v860 = vld [vmem:[%s842 + $0x44] sm:$0xf]
    %v861 = vld [vmem:[%s842 + $0x48] sm:$0xf]
    %v862 = vld [vmem:[%s842 + $0x4c] sm:$0xf]
    %v863 = vld [vmem:[%s842 + $0x50] sm:$0xf]
    %v864 = vld [vmem:[%s842 + $0x54] sm:$0xf]
    %v865 = vld [vmem:[%s842 + $0x58] sm:$0xf]
    %v866 = vld [vmem:[%s842 + $0x5c] sm:$0xf]
    %v867 = vld [vmem:[%s842 + $0x60] sm:$0xf]
    %v868 = vld [vmem:[%s842 + $0x64] sm:$0xf]
    %v869 = vld [vmem:[%s842 + $0x68] sm:$0xf]
    %v870 = vld [vmem:[%s842 + $0x6c] sm:$0xf]
    %v871 = vld [vmem:[%s842 + $0x70] sm:$0xf]
    %v872 = vld [vmem:[%s842 + $0x74] sm:$0xf]
    %v873 = vld [vmem:[%s842 + $0x78] sm:$0xf]
    %v874 = vld [vmem:[%s842 + $0x7c] sm:$0xf]
    %v875 = vld [vmem:[%s842 + $0x80] sm:$0xf]
    %v876 = vld [vmem:[%s842 + $0x84] sm:$0xf]
    %v877 = vld [vmem:[%s842 + $0x88] sm:$0xf]
    %v878 = vld [vmem:[%s842 + $0x8c] sm:$0xf]
    %v879 = vld [vmem:[%s842 + $0x90] sm:$0xf]
    %v880 = vld [vmem:[%s842 + $0x94] sm:$0xf]
    %v881 = vld [vmem:[%s842 + $0x98] sm:$0xf]
    %v882 = vld [vmem:[%s842 + $0x9c] sm:$0xf]
    %v883 = vld [vmem:[%s842 + $0xa0] sm:$0xf]
    %v884 = vld [vmem:[%s842 + $0xa4] sm:$0xf]
    %v885 = vld [vmem:[%s842 + $0xa8] sm:$0xf]
    %v886 = vld [vmem:[%s842 + $0xac] sm:$0xf]
    %v887 = vld [vmem:[%s842 + $0xb0] sm:$0xf]
    %v888 = vld [vmem:[%s842 + $0xb4] sm:$0xf]
    %v889 = vld [vmem:[%s842 + $0xb8] sm:$0xf]
    %v890 = vld [vmem:[%s842 + $0xbc] sm:$0xf]
    %v891 = vlaneseq
    %v892 = vshrl.u32 %v891, 7
    %v893 = vsub.s32 2, %v892
    %v894 = vrot.slane %v72, %v893
    %v943 = vunpack.c.l.b16 %v843
    %v944 = vunpack.c.l.b16 %v844
    %v945 = vunpack.c.l.b16 %v845
    %v946 = vunpack.c.l.b16 %v846
    %v947 = vunpack.c.l.b16 %v847
    %v948 = vunpack.c.l.b16 %v848
    %v949 = vunpack.c.l.b16 %v849
    %v950 = vunpack.c.l.b16 %v850
    %v951 = vunpack.c.l.b16 %v851
    %v952 = vunpack.c.l.b16 %v852
    %v953 = vunpack.c.l.b16 %v853
    %v954 = vunpack.c.l.b16 %v854
    %v955 = vunpack.c.l.b16 %v855
    %v956 = vunpack.c.l.b16 %v856
    %v957 = vunpack.c.l.b16 %v857
    %v958 = vunpack.c.l.b16 %v858
    %v959 = vunpack.c.l.b16 %v859
    %v960 = vunpack.c.l.b16 %v860
    %v961 = vunpack.c.l.b16 %v861
    %v962 = vunpack.c.l.b16 %v862
    %v963 = vunpack.c.l.b16 %v863
    %v964 = vunpack.c.l.b16 %v864
    %v965 = vunpack.c.l.b16 %v865
    %v966 = vunpack.c.l.b16 %v866
    %v967 = vunpack.c.l.b16 %v867
    %v968 = vunpack.c.l.b16 %v868
    %v969 = vunpack.c.l.b16 %v869
    %v970 = vunpack.c.l.b16 %v870
    %v971 = vunpack.c.l.b16 %v871
    %v972 = vunpack.c.l.b16 %v872
    %v973 = vunpack.c.l.b16 %v873
    %v974 = vunpack.c.l.b16 %v874
    %v975 = vunpack.c.l.b16 %v875
    %v976 = vunpack.c.l.b16 %v876
    %v977 = vunpack.c.l.b16 %v877
    %v978 = vunpack.c.l.b16 %v878
    %v979 = vunpack.c.l.b16 %v879
    %v980 = vunpack.c.l.b16 %v880
    %v981 = vunpack.c.l.b16 %v881
    %v982 = vunpack.c.l.b16 %v882
    %v983 = vunpack.c.l.b16 %v883
    %v984 = vunpack.c.l.b16 %v884
    %v985 = vunpack.c.l.b16 %v885
    %v986 = vunpack.c.l.b16 %v886
    %v987 = vunpack.c.l.b16 %v887
    %v988 = vunpack.c.l.b16 %v888
    %v989 = vunpack.c.l.b16 %v889
    %v990 = vunpack.c.l.b16 %v890
    %v991 = vpack.c.b16 %v944, %v943
    %v992 = vpack.c.b16 %v946, %v945
    %v993 = vpack.c.b16 %v948, %v947
    %v994 = vpack.c.b16 %v950, %v949
    %v995 = vpack.c.b16 %v952, %v951
    %v996 = vpack.c.b16 %v954, %v953
    %v997 = vpack.c.b16 %v956, %v955
    %v998 = vpack.c.b16 %v958, %v957
    %v999 = vpack.c.b16 %v960, %v959
    %v1000 = vpack.c.b16 %v962, %v961
    %v1001 = vpack.c.b16 %v964, %v963
    %v1002 = vpack.c.b16 %v966, %v965
    %v1003 = vpack.c.b16 %v968, %v967
    %v1004 = vpack.c.b16 %v970, %v969
    %v1005 = vpack.c.b16 %v972, %v971
    %v1006 = vpack.c.b16 %v974, %v973
    %v1007 = vpack.c.b16 %v976, %v975
    %v1008 = vpack.c.b16 %v978, %v977
    %v1009 = vpack.c.b16 %v980, %v979
    %v1010 = vpack.c.b16 %v982, %v981
    %v1011 = vpack.c.b16 %v984, %v983
    %v1012 = vpack.c.b16 %v986, %v985
    %v1013 = vpack.c.b16 %v988, %v987
    %v1014 = vpack.c.b16 %v990, %v989
    %1039 = vmatprep.subr.bf16.mxu0 0
    %1040 = vmatpush1.bf16.msra.mxu0 %v998
    %1041 = vmatprep.subr.bf16.mxu0 0
    %1042 = vmatpush1.bf16.msra.mxu0 %v997
    %1043 = vmatprep.subr.bf16.mxu0 0
    %1044 = vmatpush1.bf16.msra.mxu0 %v996
    %1045 = vmatprep.subr.bf16.mxu0 0
    %1046 = vmatpush1.bf16.msra.mxu0 %v995
    %1047 = vmatprep.subr.bf16.mxu0 0
    %1048 = vmatpush1.bf16.msra.mxu0 %v994
    %1049 = vmatprep.subr.bf16.mxu0 0
    %1050 = vmatpush1.bf16.msra.mxu0 %v993
    %1051 = vmatprep.subr.bf16.mxu0 0
    %1052 = vmatpush1.bf16.msra.mxu0 %v992
    %1053 = vmatprep.subr.bf16.mxu0 0
    %1054 = vmatpush1.bf16.msra.mxu0 %v991
    %1055 = vmatprep.subr.bf16.mxu0 0
    %1056 = vmatpush2.bf16.msra.mxu0 %v1006
    %1057 = vmatprep.subr.bf16.mxu0 0
    %1058 = vmatpush2.bf16.msra.mxu0 %v1005
    %1059 = vmatprep.subr.bf16.mxu0 0
    %1060 = vmatpush2.bf16.msra.mxu0 %v1004
    %1061 = vmatprep.subr.bf16.mxu0 0
    %1062 = vmatpush2.bf16.msra.mxu0 %v1003
    %1063 = vmatprep.subr.bf16.mxu0 0
    %1064 = vmatpush2.bf16.msra.mxu0 %v1002
    %1065 = vmatprep.subr.bf16.mxu0 0
    %1066 = vmatpush2.bf16.msra.mxu0 %v1001
    %1067 = vmatprep.subr.bf16.mxu0 0
    %1068 = vmatpush2.bf16.msra.mxu0 %v1000
    %1069 = vmatprep.subr.bf16.mxu0 0
    %1070 = vmatpush2.bf16.msra.mxu0 %v999
    %1071 = vmatprep.mubr.bf16.mxu0 %v837
    %1072 = vmatmul.mubr.bf16.gmra.mxu0 %v836
    %v1073 = vpop.f32.mrf.mxu0
    %v1074 = vadd.f32 %v894, %v1073
    %v1075 = vpop.f32.mrf.mxu0
    %v1076 = vpop.f32.mrf.mxu0
    %v1077 = vadd.f32 %v894, %v1076
    %v1078 = vpop.f32.mrf.mxu0
    %1079 = vmatprep.mubr.bf16.mxu0 %v840
    %1080 = vmatmul.mubr.bf16.gmra.mxu0 %v839
    %v1081 = vpop.f32.mrf.mxu0
    %v1082 = vadd.f32 %v894, %v1081
    %v1083 = vpop.f32.mrf.mxu0
    %v1084 = vpop.f32.mrf.mxu0
    %v1085 = vadd.f32 %v894, %v1084
    %v1086 = vpop.f32.mrf.mxu0
    %1087 = vdwg.mxu0
    %1088 = vmatprep.subr.bf16.mxu0 0
    %1089 = vmatpush1.bf16.msra.mxu0 %v1014
    %1090 = vmatprep.subr.bf16.mxu0 0
    %1091 = vmatpush1.bf16.msra.mxu0 %v1013
    %1092 = vmatprep.subr.bf16.mxu0 0
    %1093 = vmatpush1.bf16.msra.mxu0 %v1012
    %1094 = vmatprep.subr.bf16.mxu0 0
    %1095 = vmatpush1.bf16.msra.mxu0 %v1011
    %1096 = vmatprep.subr.bf16.mxu0 0
    %1097 = vmatpush1.bf16.msra.mxu0 %v1010
    %1098 = vmatprep.subr.bf16.mxu0 0
    %1099 = vmatpush1.bf16.msra.mxu0 %v1009
    %1100 = vmatprep.subr.bf16.mxu0 0
    %1101 = vmatpush1.bf16.msra.mxu0 %v1008
    %1102 = vmatprep.subr.bf16.mxu0 0
    %1103 = vmatpush1.bf16.msra.mxu0 %v1007
    %1104 = vmatprep.subr.bf16.mxu0 0
    %1105 = vmatpush2.bf16.msra.mxu0 0
    %1106 = vmatprep.subr.bf16.mxu0 0
    %1107 = vmatpush2.bf16.msra.mxu0 0
    %1108 = vmatprep.subr.bf16.mxu0 0
    %1109 = vmatpush2.bf16.msra.mxu0 0
    %1110 = vmatprep.subr.bf16.mxu0 0
    %1111 = vmatpush2.bf16.msra.mxu0 0
    %1112 = vmatprep.subr.bf16.mxu0 0
    %1113 = vmatpush2.bf16.msra.mxu0 0
    %1114 = vmatprep.subr.bf16.mxu0 0
    %1115 = vmatpush2.bf16.msra.mxu0 0
    %1116 = vmatprep.subr.bf16.mxu0 0
    %1117 = vmatpush2.bf16.msra.mxu0 0
    %1118 = vmatprep.subr.bf16.mxu0 0
    %1119 = vmatpush2.bf16.msra.mxu0 0
    %1120 = vmatprep.mubr.bf16.mxu0 0
    %1121 = vmatmul.mubr.bf16.gmra.mxu0 %v838
    %v1122 = vpop.f32.mrf.mxu0
    %v1123 = vadd.f32 %v1074, %v1122
    %v1124 = vpop.f32.mrf.mxu0
    %v1125 = vpop.f32.mrf.mxu0
    %v1126 = vadd.f32 %v1077, %v1125
    %v1127 = vpop.f32.mrf.mxu0
    %1128 = vmatprep.mubr.bf16.mxu0 0
    %1129 = vmatmul.mubr.bf16.gmra.mxu0 %v841
    %v1130 = vpop.f32.mrf.mxu0
    %v1131 = vadd.f32 %v1082, %v1130
    %v1132 = vpop.f32.mrf.mxu0
    %v1133 = vpop.f32.mrf.mxu0
    %v1134 = vadd.f32 %v1085, %v1133
    %v1135 = vpop.f32.mrf.mxu0
    %1136 = vdwg.mxu0
    %v1137 = vadd.f32 %v1123, %v431
    %v1138 = vadd.f32 %v1126, %v432
    %v1139 = vadd.f32 %v1131, %v433
    %v1140 = vadd.f32 %v1134, %v434
    %v1141 = vmax.f32 %v1137, 0.0
    %v1142 = vmax.f32 %v1138, 0.0
    %v1143 = vmax.f32 %v1139, 0.0
    %v1144 = vmax.f32 %v1140, 0.0
    %v1145 = vadd.f32 %v1141, %v1142
    %v1146 = vrot.slane %v1145, 4
    %v1147 = vadd.f32 %v1145, %v1146
    %v1148 = vrot.slane %v1147, 2
    %v1149 = vadd.f32 %v1147, %v1148
    %v1150 = vrot.slane %v1149, 1
    %v1151 = vadd.f32 %v1149, %v1150
    %v1152 = vadd.f32 %v1143, %v1144
    %v1153 = vrot.slane %v1152, 4
    %v1154 = vadd.f32 %v1152, %v1153
    %v1155 = vrot.slane %v1154, 2
    %v1156 = vadd.f32 %v1154, %v1155
    %v1157 = vrot.slane %v1156, 1
    %v1158 = vadd.f32 %v1156, %v1157
    %v1159 = vld [vmem:[#allocation9] sm:$0xff]
    %v1160 = vld [vmem:[#allocation9 + $0x8] sm:$0xff]
    %v1161 = vld [vmem:[#allocation9 + $0x10] sm:$0xff]
    %v1162 = vld [vmem:[#allocation9 + $0x18] sm:$0xff]
    %v1163 = vld [vmem:[#allocation9 + $0x20] sm:$0xff]
    %v1164 = vld [vmem:[#allocation9 + $0x28] sm:$0xff]
    %v1165 = vld [vmem:[#allocation9 + $0x30] sm:$0xff]
    %v1166 = vld [vmem:[#allocation9 + $0x38] sm:$0xff]
    %v1167 = vld [vmem:[#allocation9 + $0x40] sm:$0xff]
    %v1168 = vld [vmem:[#allocation9 + $0x48] sm:$0xff]
    %v1169 = vld [vmem:[#allocation9 + $0x50] sm:$0xff]
    %v1170 = vld [vmem:[#allocation9 + $0x58] sm:$0xff]
    %v1171 = vld [vmem:[#allocation9 + $0x60] sm:$0xff]
    %v1172 = vld [vmem:[#allocation9 + $0x68] sm:$0xff]
    %v1173 = vld [vmem:[#allocation9 + $0x70] sm:$0xff]
    %v1174 = vld [vmem:[#allocation9 + $0x78] sm:$0xff]
    %v1175 = vlaneseq
    %v1176 = vshrl.u32 %v1175, 7
    %v1177 = vsub.s32 3, %v1176
    %v1178 = vrot.slane %v72, %v1177
    %vm1181 = vcmask 1041409
    %v1182 = vsel %vm1181, %v1158, %v1151
    %1184 = vmatprep.subr.mxu0 0.0
    %1185 = vmatpush1.msra.mxu0 %v1174
    %1186 = vmatprep.subr.mxu0 0.0
    %1187 = vmatpush1.msra.mxu0 %v1173
    %1188 = vmatprep.subr.mxu0 0.0
    %1189 = vmatpush1.msra.mxu0 %v1172
    %1190 = vmatprep.subr.mxu0 0.0
    %1191 = vmatpush1.msra.mxu0 %v1171
    %1192 = vmatprep.subr.mxu0 0.0
    %1193 = vmatpush1.msra.mxu0 %v1170
    %1194 = vmatprep.subr.mxu0 0.0
    %1195 = vmatpush1.msra.mxu0 %v1169
    %1196 = vmatprep.subr.mxu0 0.0
    %1197 = vmatpush1.msra.mxu0 %v1168
    %1198 = vmatprep.subr.mxu0 0.0
    %1199 = vmatpush1.msra.mxu0 %v1167
    %1200 = vmatprep.subr.mxu0 0.0
    %1201 = vmatpush1.msra.mxu0 %v1166
    %1202 = vmatprep.subr.mxu0 0.0
    %1203 = vmatpush1.msra.mxu0 %v1165
    %1204 = vmatprep.subr.mxu0 0.0
    %1205 = vmatpush1.msra.mxu0 %v1164
    %1206 = vmatprep.subr.mxu0 0.0
    %1207 = vmatpush1.msra.mxu0 %v1163
    %1208 = vmatprep.subr.mxu0 0.0
    %1209 = vmatpush1.msra.mxu0 %v1162
    %1210 = vmatprep.subr.mxu0 0.0
    %1211 = vmatpush1.msra.mxu0 %v1161
    %1212 = vmatprep.subr.mxu0 0.0
    %1213 = vmatpush1.msra.mxu0 %v1160
    %1214 = vmatprep.subr.mxu0 0.0
    %1215 = vmatpush1.msra.mxu0 %v1159
    %1216 = vmatprep.subr.mxu0 0.0
    %1217 = vmatpush2.msra.mxu0 0.0
    %1218 = vmatprep.subr.mxu0 0.0
    %1219 = vmatpush2.msra.mxu0 0.0
    %1220 = vmatprep.subr.mxu0 0.0
    %1221 = vmatpush2.msra.mxu0 0.0
    %1222 = vmatprep.subr.mxu0 0.0
    %1223 = vmatpush2.msra.mxu0 0.0
    %1224 = vmatprep.subr.mxu0 0.0
    %1225 = vmatpush2.msra.mxu0 0.0
    %1226 = vmatprep.subr.mxu0 0.0
    %1227 = vmatpush2.msra.mxu0 0.0
    %1228 = vmatprep.subr.mxu0 0.0
    %1229 = vmatpush2.msra.mxu0 0.0
    %1230 = vmatprep.subr.mxu0 0.0
    %1231 = vmatpush2.msra.mxu0 0.0
    %1232 = vmatprep.subr.mxu0 0.0
    %1233 = vmatpush2.msra.mxu0 0.0
    %1234 = vmatprep.subr.mxu0 0.0
    %1235 = vmatpush2.msra.mxu0 0.0
    %1236 = vmatprep.subr.mxu0 0.0
    %1237 = vmatpush2.msra.mxu0 0.0
    %1238 = vmatprep.subr.mxu0 0.0
    %1239 = vmatpush2.msra.mxu0 0.0
    %1240 = vmatprep.subr.mxu0 0.0
    %1241 = vmatpush2.msra.mxu0 0.0
    %1242 = vmatprep.subr.mxu0 0.0
    %1243 = vmatpush2.msra.mxu0 0.0
    %1244 = vmatprep.subr.mxu0 0.0
    %1245 = vmatpush2.msra.mxu0 0.0
    %1246 = vmatprep.subr.mxu0 0.0
    %1247 = vmatpush2.msra.mxu0 0.0
    %1248 = vmatprep.mubr.f32.mxu0 0.0
    %1249 = vmatmul.mubr.f32.gmra.mxu0 %v1182
    %v1250 = vpop.f32.mrf.mxu0
    %v1251 = vadd.f32 %v1178, %v1250
    %v1252 = vpop.f32.mrf.mxu0
    %1253 = vdwg.mxu0
    %1254 = vst [vmem:[#allocation11] sm:$0x3] %v1251
    // Predicated region
    $region34: #{tpu_custom_call.1} parent=1 // pred_check
      _
    $region35: #{tpu_custom_call.1} parent=1 // pred_check_branch
      %1256 = sbr.rel (0) target = $region37
    $region36: #{tpu_custom_call.1} parent=1 // pred_region
      %s1258 = ssub.s32 32, 32
      %1259 = vsyncadd [#allocation5], %s1258
      %s1261 = sshll.u32 [#allocation11], 4
      %s1262 = int_to_ptr.vmem [resolvable:$true] %s1261
      %1264 = dma.vmem_to_hbm [thread:$0]  %s1262, 32, %s4, [#allocation5]
    $region37: #{tpu_custom_call.1} parent=1 // pred_fallthru
      _
    // Predicated region
    $region38: #{tpu_custom_call.1} parent=1 // pred_check
      _
    $region39: #{tpu_custom_call.1} parent=1 // pred_check_branch
      %1266 = sbr.rel (0) target = $region41
    $region40: #{tpu_custom_call.1} parent=1 // pred_region
      %1267 = dma.done [#allocation5], 32
    $region41: #{tpu_custom_call.1} parent=1 // pred_fallthru
      _
    %1268 = vsyncpa [#allocation4], 1
    %1269 = vsyncpa [#allocation7], 1
    %1270 = vsyncpa [#allocation10], 1
    %1271 = vsyncpa [#allocation5], 1

</llo_original>
